<compile_context>
chip_gen: v7x
topology: tpu7x:2x2x1
jax: 0.10.0
libtpu: 0.0.40
codegen_flags: <defaults>
</compile_context>

<pallas_src>
import functools

import jax
import jax.numpy as jnp
import numpy as np
from jax.experimental import pallas as pl
from jax.experimental.pallas import tpu as pltpu


def _basic_block_kernel(W, x_ref, w_ref, b_ref, m_ref, out_ref):
    # x_ref  : (1, CP, L)      f32  packed activations (CP = SP*C, L = LF*H*W)
    # w_ref  : (2, CP, 9*CP)   bf16 [conv, Cout_packed, tap*CP + Cin_packed] (block-diag over SP)
    # b_ref  : (2, CP, 1)      f32  biases (tiled over SP)
    # m_ref  : (9*CP, L)       f32  0/1 border masks, pre-broadcast to the patch layout
    # out_ref: (1, CP, L)      f32
    L = x_ref.shape[-1]
    x = x_ref[0]                                   # (CP, L) f32, lane-dense
    m = m_ref[...]                                 # (9*CP, L) f32

    def conv3x3_relu(a, conv_idx):
        # Build im2col patch: 9 lane-rolled copies of `a` stacked along sublanes.
        taps = []
        for k in range(9):
            oy, ox = k // 3 - 1, k % 3 - 1         # offsets in {-1,0,1}
            if oy == 0 and ox == 0:
                taps.append(a)                     # center tap: no shift needed
            else:
                shift = (-(oy * W + ox)) % L       # rolled[j] = a[j + oy*W + ox]
                taps.append(pltpu.roll(a, shift, axis=1))
        # Zero the roll-wraparound / cross-image positions, then cast for the MXU.
        patch = (jnp.concatenate(taps, axis=0) * m).astype(jnp.bfloat16)   # (9*CP, L)
        acc = jnp.dot(w_ref[conv_idx], patch,
                      preferred_element_type=jnp.float32)                  # (CP, L) f32
        return jnp.maximum(acc + b_ref[conv_idx], 0.0)

    out1 = conv3x3_relu(x, 0)                      # conv1 + ReLU (stays on-chip, f32)
    out_ref[0] = conv3x3_relu(out1, 1) + x         # conv2 + ReLU, then residual add


def basic_block(x_nchw, w1, b1, w2, b2):
    """BasicBlock forward. x_nchw: (N, C, H, W) f32; w*: (C, C, 3, 3); b*: (C,)."""
    N, C, H, W = x_nchw.shape
    HW = H * W

    # --- packing factors --------------------------------------------------------
    # SP images stacked along sublanes (fills the 8 f32 sublanes when C < 8),
    # LF images folded along lanes, num_steps grid steps (even -> both v7x TCs).
    SP = max(1, 8 // C)
    while SP > 1 and N % SP != 0:
        SP //= 2
    G = N // SP
    num_steps = 2 if (G >= 2 and G % 2 == 0) else 1
    LF = G // num_steps
    CP = SP * C
    L = LF * HW

    # --- activations: (num_steps, CP, L); image n = ((s*LF)+lf)*SP + sp ----------
    x_packed = jnp.transpose(
        x_nchw.reshape(num_steps, LF, SP, C, HW), (0, 2, 3, 1, 4)
    ).reshape(num_steps, CP, L)

    # --- weights: (2, CP, 9*CP), block-diagonal over SP, bf16 for the MXU --------
    def pack_w(w):
        w9 = jnp.transpose(w, (2, 3, 0, 1)).reshape(9, C, C)          # (tap, co, ci)
        wb = jnp.einsum('ab,kij->aikbj', jnp.eye(SP, dtype=w.dtype), w9)
        return wb.reshape(CP, 9 * CP)
    w_all = jnp.stack([pack_w(w1), pack_w(w2)], axis=0).astype(jnp.bfloat16)
    b_all = jnp.stack([jnp.tile(b1, SP), jnp.tile(b2, SP)], axis=0).reshape(2, CP, 1)

    # --- border masks ("same" zero padding), pre-broadcast to patch layout -------
    masks_np = np.zeros((9, HW), np.float32)
    for k in range(9):
        oy, ox = k // 3 - 1, k % 3 - 1
        m2d = np.zeros((H, W), np.float32)
        m2d[max(0, -oy):min(H, H - oy), max(0, -ox):min(W, W - ox)] = 1.0
        masks_np[k] = m2d.reshape(-1)
    masks = jnp.asarray(
        np.broadcast_to(masks_np[:, None, None, :], (9, CP, LF, HW))
        .reshape(9 * CP, L))

    kernel = functools.partial(_basic_block_kernel, W)
    out = pl.pallas_call(
        kernel,
        out_shape=jax.ShapeDtypeStruct((num_steps, CP, L), jnp.float32),
        grid_spec=pltpu.PrefetchScalarGridSpec(
            num_scalar_prefetch=0,
            grid=(num_steps,),
            in_specs=[
                pl.BlockSpec((1, CP, L), lambda s: (s, 0, 0)),
                pl.BlockSpec((2, CP, 9 * CP), lambda s: (0, 0, 0)),
                pl.BlockSpec((2, CP, 1), lambda s: (0, 0, 0)),
                pl.BlockSpec((9 * CP, L), lambda s: (0, 0)),
            ],
            out_specs=pl.BlockSpec((1, CP, L), lambda s: (s, 0, 0)),
        ),
        compiler_params=pltpu.CompilerParams(
            dimension_semantics=("parallel",)),    # even axis feeds both TCs on v7x
    )(x_packed, w_all, b_all, masks)

    # --- unpack back to NCHW ------------------------------------------------------
    return jnp.transpose(
        out.reshape(num_steps, SP, C, LF, HW), (0, 3, 1, 2, 4)
    ).reshape(N, C, H, W)
    # TODO(synk): for real ResNet sizes (large C, large H*W), tile H into row strips
    # with a 1-row halo sized for v7x's 64 MiB VMEM (and v5e's 16 MiB scoped default),
    # raising vmem_limit_bytes explicitly, instead of keeping a whole image per step.


def _reference(x, w1, b1, w2, b2):
    dn = ('NCHW', 'OIHW', 'NCHW')
    o = jax.lax.conv_general_dilated(x, w1, (1, 1), 'SAME', dimension_numbers=dn)
    o = jnp.maximum(o + b1[None, :, None, None], 0.0)
    o = jax.lax.conv_general_dilated(o, w2, (1, 1), 'SAME', dimension_numbers=dn)
    o = jnp.maximum(o + b2[None, :, None, None], 0.0)
    return o + x


if __name__ == "__main__":
    planes = 4                       # channels
    N, H, W = 4, 16, 16              # N=4 exercises both sublane packing and 2 grid steps

    key = jax.random.PRNGKey(0)
    kx, kw1, kw2, kb1, kb2 = jax.random.split(key, 5)

    x = jax.random.normal(kx, (N, planes, H, W), dtype=jnp.float32)
    # module init: weight ~ N(0, 0.01); bias = 0 -- use nonzero biases in the test
    # so a bias-broadcast bug would be caught (forward semantics unchanged).
    w1 = 0.01 * jax.random.normal(kw1, (planes, planes, 3, 3), dtype=jnp.float32)
    w2 = 0.01 * jax.random.normal(kw2, (planes, planes, 3, 3), dtype=jnp.float32)
    b1 = 0.1 * jax.random.normal(kb1, (planes,), dtype=jnp.float32)
    b2 = 0.1 * jax.random.normal(kb2, (planes,), dtype=jnp.float32)

    out = basic_block(x, w1, b1, w2, b2)
    out = jax.block_until_ready(out)

    ref = jax.block_until_ready(_reference(x, w1, b1, w2, b2))
    # bf16 MXU operands with f32 accumulation -> loosened tolerance (per perf review).
    np.testing.assert_allclose(np.asarray(out), np.asarray(ref),
                               rtol=2e-2, atol=5e-3)
    print("KERNEL_OK")
</pallas_src>

<mosaic_0001>
module attributes {stable_mosaic.version = 11 : i64} {
  func.func @_basic_block_kernel(%arg0: i32, %arg1: memref<1x8x256xf32, #tpu.memory_space<vmem>>, %arg2: memref<2x8x72xbf16, #tpu.memory_space<vmem>>, %arg3: memref<2x8x1xf32, #tpu.memory_space<vmem>>, %arg4: memref<72x256xf32, #tpu.memory_space<vmem>>, %arg5: memref<1x8x256xf32, #tpu.memory_space<vmem>>) attributes {dimension_semantics = [#tpu.dimension_semantics<parallel>], iteration_bounds = array<i64: 2>, scalar_prefetch = 0 : i64, scratch_operands = 0 : i64, tpu.core_type = #tpu.core_type<tc>, window_params = [{transform_indices = @transform_0, window_bounds = array<i64: 1, 8, 256>}, {pipeline_mode = #tpu.pipeline_mode<synchronous>, transform_indices = @transform_1, window_bounds = array<i64: 2, 8, 72>}, {pipeline_mode = #tpu.pipeline_mode<synchronous>, transform_indices = @transform_2, window_bounds = array<i64: 2, 8, 1>}, {pipeline_mode = #tpu.pipeline_mode<synchronous>, transform_indices = @transform_3, window_bounds = array<i64: 72, 256>}, {transform_indices = @transform_4, window_bounds = array<i64: 1, 8, 256>}]} {
    %c0 = arith.constant 0 : index
    %c0_0 = arith.constant 0 : index
    %c0_1 = arith.constant 0 : index
    %0 = vector.load %arg1[%c0, %c0_0, %c0_1] : memref<1x8x256xf32, #tpu.memory_space<vmem>>, vector<1x8x256xf32>
    %1 = vector.shape_cast %0 : vector<1x8x256xf32> to vector<8x256xf32>
    %c0_2 = arith.constant 0 : index
    %c0_3 = arith.constant 0 : index
    %2 = vector.load %arg4[%c0_2, %c0_3] : memref<72x256xf32, #tpu.memory_space<vmem>>, vector<72x256xf32>
    %c17_i32 = arith.constant 17 : i32
    %3 = tpu.dynamic_rotate %1 by %c17_i32 dim 1 : vector<8x256xf32>, i32 -> vector<8x256xf32>
    %c16_i32 = arith.constant 16 : i32
    %4 = tpu.dynamic_rotate %1 by %c16_i32 dim 1 : vector<8x256xf32>, i32 -> vector<8x256xf32>
    %c15_i32 = arith.constant 15 : i32
    %5 = tpu.dynamic_rotate %1 by %c15_i32 dim 1 : vector<8x256xf32>, i32 -> vector<8x256xf32>
    %c1_i32 = arith.constant 1 : i32
    %6 = tpu.dynamic_rotate %1 by %c1_i32 dim 1 : vector<8x256xf32>, i32 -> vector<8x256xf32>
    %c255_i32 = arith.constant 255 : i32
    %7 = tpu.dynamic_rotate %1 by %c255_i32 dim 1 : vector<8x256xf32>, i32 -> vector<8x256xf32>
    %c241_i32 = arith.constant 241 : i32
    %8 = tpu.dynamic_rotate %1 by %c241_i32 dim 1 : vector<8x256xf32>, i32 -> vector<8x256xf32>
    %c240_i32 = arith.constant 240 : i32
    %9 = tpu.dynamic_rotate %1 by %c240_i32 dim 1 : vector<8x256xf32>, i32 -> vector<8x256xf32>
    %c239_i32 = arith.constant 239 : i32
    %10 = tpu.dynamic_rotate %1 by %c239_i32 dim 1 : vector<8x256xf32>, i32 -> vector<8x256xf32>
    %11 = tpu.concatenate %3, %4, %5, %6, %1, %7, %8, %9, %10 in 0 : vector<8x256xf32>, vector<8x256xf32>, vector<8x256xf32>, vector<8x256xf32>, vector<8x256xf32>, vector<8x256xf32>, vector<8x256xf32>, vector<8x256xf32>, vector<8x256xf32> -> vector<72x256xf32>
    %12 = arith.mulf %11, %2 : vector<72x256xf32>
    %13 = arith.truncf %12 : vector<72x256xf32> to vector<72x256xbf16>
    %c0_4 = arith.constant 0 : index
    %c0_5 = arith.constant 0 : index
    %c0_6 = arith.constant 0 : index
    %14 = vector.load %arg2[%c0_4, %c0_5, %c0_6] : memref<2x8x72xbf16, #tpu.memory_space<vmem>>, vector<1x8x72xbf16>
    %15 = vector.shape_cast %14 : vector<1x8x72xbf16> to vector<8x72xbf16>
    %cst = arith.constant dense<0.000000e+00> : vector<8x256xf32>
    %16 = tpu.matmul %15, %13, %cst {dimension_numbers = #tpu.dot_dimension_numbers<[1], [0], [0], [1], [0, 0, 1, 1], [], []>} : vector<8x72xbf16>, vector<72x256xbf16>, vector<8x256xf32> -> vector<8x256xf32>
    %c0_7 = arith.constant 0 : index
    %c0_8 = arith.constant 0 : index
    %c0_9 = arith.constant 0 : index
    %17 = vector.load %arg3[%c0_7, %c0_8, %c0_9] : memref<2x8x1xf32, #tpu.memory_space<vmem>>, vector<1x8x1xf32>
    %18 = vector.shape_cast %17 : vector<1x8x1xf32> to vector<8x1xf32>
    %19 = vector.broadcast %18 : vector<8x1xf32> to vector<8x256xf32>
    %20 = arith.addf %16, %19 : vector<8x256xf32>
    %cst_10 = arith.constant 0.000000e+00 : f32
    %21 = vector.broadcast %cst_10 : f32 to vector<8x256xf32>
    %22 = arith.maximumf %20, %21 : vector<8x256xf32>
    %c17_i32_11 = arith.constant 17 : i32
    %23 = tpu.dynamic_rotate %22 by %c17_i32_11 dim 1 : vector<8x256xf32>, i32 -> vector<8x256xf32>
    %c16_i32_12 = arith.constant 16 : i32
    %24 = tpu.dynamic_rotate %22 by %c16_i32_12 dim 1 : vector<8x256xf32>, i32 -> vector<8x256xf32>
    %c15_i32_13 = arith.constant 15 : i32
    %25 = tpu.dynamic_rotate %22 by %c15_i32_13 dim 1 : vector<8x256xf32>, i32 -> vector<8x256xf32>
    %c1_i32_14 = arith.constant 1 : i32
    %26 = tpu.dynamic_rotate %22 by %c1_i32_14 dim 1 : vector<8x256xf32>, i32 -> vector<8x256xf32>
    %c255_i32_15 = arith.constant 255 : i32
    %27 = tpu.dynamic_rotate %22 by %c255_i32_15 dim 1 : vector<8x256xf32>, i32 -> vector<8x256xf32>
    %c241_i32_16 = arith.constant 241 : i32
    %28 = tpu.dynamic_rotate %22 by %c241_i32_16 dim 1 : vector<8x256xf32>, i32 -> vector<8x256xf32>
    %c240_i32_17 = arith.constant 240 : i32
    %29 = tpu.dynamic_rotate %22 by %c240_i32_17 dim 1 : vector<8x256xf32>, i32 -> vector<8x256xf32>
    %c239_i32_18 = arith.constant 239 : i32
    %30 = tpu.dynamic_rotate %22 by %c239_i32_18 dim 1 : vector<8x256xf32>, i32 -> vector<8x256xf32>
    %31 = tpu.concatenate %23, %24, %25, %26, %22, %27, %28, %29, %30 in 0 : vector<8x256xf32>, vector<8x256xf32>, vector<8x256xf32>, vector<8x256xf32>, vector<8x256xf32>, vector<8x256xf32>, vector<8x256xf32>, vector<8x256xf32>, vector<8x256xf32> -> vector<72x256xf32>
    %32 = arith.mulf %31, %2 : vector<72x256xf32>
    %33 = arith.truncf %32 : vector<72x256xf32> to vector<72x256xbf16>
    %c1 = arith.constant 1 : index
    %c0_19 = arith.constant 0 : index
    %c0_20 = arith.constant 0 : index
    %34 = vector.load %arg2[%c1, %c0_19, %c0_20] : memref<2x8x72xbf16, #tpu.memory_space<vmem>>, vector<1x8x72xbf16>
    %35 = vector.shape_cast %34 : vector<1x8x72xbf16> to vector<8x72xbf16>
    %cst_21 = arith.constant dense<0.000000e+00> : vector<8x256xf32>
    %36 = tpu.matmul %35, %33, %cst_21 {dimension_numbers = #tpu.dot_dimension_numbers<[1], [0], [0], [1], [0, 0, 1, 1], [], []>} : vector<8x72xbf16>, vector<72x256xbf16>, vector<8x256xf32> -> vector<8x256xf32>
    %c1_22 = arith.constant 1 : index
    %c0_23 = arith.constant 0 : index
    %c0_24 = arith.constant 0 : index
    %37 = vector.load %arg3[%c1_22, %c0_23, %c0_24] : memref<2x8x1xf32, #tpu.memory_space<vmem>>, vector<1x8x1xf32>
    %38 = vector.shape_cast %37 : vector<1x8x1xf32> to vector<8x1xf32>
    %39 = vector.broadcast %38 : vector<8x1xf32> to vector<8x256xf32>
    %40 = arith.addf %36, %39 : vector<8x256xf32>
    %cst_25 = arith.constant 0.000000e+00 : f32
    %41 = vector.broadcast %cst_25 : f32 to vector<8x256xf32>
    %42 = arith.maximumf %40, %41 : vector<8x256xf32>
    %43 = arith.addf %42, %1 : vector<8x256xf32>
    %c0_26 = arith.constant 0 : index
    %c0_27 = arith.constant 0 : index
    %c0_28 = arith.constant 0 : index
    %44 = vector.load %arg5[%c0_26, %c0_27, %c0_28] : memref<1x8x256xf32, #tpu.memory_space<vmem>>, vector<1x8x256xf32>
    %45 = vector.shape_cast %44 : vector<1x8x256xf32> to vector<8x256xf32>
    %46 = vector.shape_cast %43 : vector<8x256xf32> to vector<1x8x256xf32>
    tpu.vector_store %arg5[%c0_26, %c0_27, %c0_28], %46 {strides = array<i32>} : memref<1x8x256xf32, #tpu.memory_space<vmem>>, vector<1x8x256xf32>,
    return
  }
  func.func @transform_0(%arg0: i32) -> (i32, i32, i32) {
    %c0_i32 = arith.constant 0 : i32
    %c0_i32_0 = arith.constant 0 : i32
    %c0_i32_1 = arith.constant 0 : i32
    return %arg0, %c0_i32, %c0_i32_0 : i32, i32, i32
  }
  func.func @transform_1(%arg0: i32) -> (i32, i32, i32) {
    %c0_i32 = arith.constant 0 : i32
    %c0_i32_0 = arith.constant 0 : i32
    %c0_i32_1 = arith.constant 0 : i32
    %c0_i32_2 = arith.constant 0 : i32
    return %c0_i32, %c0_i32_0, %c0_i32_1 : i32, i32, i32
  }
  func.func @transform_2(%arg0: i32) -> (i32, i32, i32) {
    %c0_i32 = arith.constant 0 : i32
    %c0_i32_0 = arith.constant 0 : i32
    %c0_i32_1 = arith.constant 0 : i32
    %c0_i32_2 = arith.constant 0 : i32
    return %c0_i32, %c0_i32_0, %c0_i32_1 : i32, i32, i32
  }
  func.func @transform_3(%arg0: i32) -> (i32, i32) {
    %c0_i32 = arith.constant 0 : i32
    %c0_i32_0 = arith.constant 0 : i32
    %c0_i32_1 = arith.constant 0 : i32
    return %c0_i32, %c0_i32_0 : i32, i32
  }
  func.func @transform_4(%arg0: i32) -> (i32, i32, i32) {
    %c0_i32 = arith.constant 0 : i32
    %c0_i32_0 = arith.constant 0 : i32
    %c0_i32_1 = arith.constant 0 : i32
    return %arg0, %c0_i32, %c0_i32_0 : i32, i32, i32
  }
}

</mosaic_0001>

<llo_original>
// kernel: tpu_custom_call.1
$region0: #{tpu_custom_call.1}
  #allocation0 [shape = 'u32[]', space=smem, size = 0x4, offset = 0x4, fixed_abs, tag = 'smem constant byte address 0x4 - core index']
  #allocation1 [shape = 'u32[144,128]{1,0:T(1,128)}', space=vmem, size = 0x12000, scoped, tag = 'internal scratch']
  %s0 = inlined_call_operand.hbm [shape: f32[2,8,256], index: 0, kind: input, shape index: {}]
  %s1 = inlined_call_operand.vmem [shape: bf16[2,8,72], index: 1, kind: input, shape index: {}]
  %s2 = inlined_call_operand.vmem [shape: f32[2,8,1], index: 2, kind: input, shape index: {}]
  %s3 = inlined_call_operand.hbm [shape: f32[72,256], index: 3, kind: input, shape index: {}]
  %s4 = inlined_call_operand.hbm [shape: f32[2,8,256], index: 4, kind: output, shape index: {}]
  %s5 = sld [smem:[#allocation0]]
  $region57: #{tpu_custom_call.1} parent=0
    _
  %s7 = ssub.s32 1, %s5
  %s8 = scalar_select 0, %s7, %s5
  $region1: #{tpu_custom_call.1} parent=0
    #allocation2 [shape = 'u8[16384]{0}', space=vmem, size = 0x4000, scoped, tag = 'input window, operand 0']
    #allocation3 [shape = 's32[2]{0}', space=sflag, size = 0x8, scoped, tag = 'scoped memory for tpu_custom_call.1']
    #allocation4 [shape = 's32[2]{0}', space=sflag, size = 0x8, scoped, tag = 'scoped memory for tpu_custom_call.1']
    #allocation5 [shape = 'u8[73728]{0}', space=vmem, size = 0x12000, scoped, tag = 'input window, operand 3, single buffered']
    #allocation6 [shape = 's32[1]{0}', space=sflag, size = 0x4, scoped, tag = 'scoped memory for tpu_custom_call.1']
    #allocation7 [shape = 'u8[16384]{0}', space=vmem, size = 0x4000, scoped, tag = 'output window, operand 0']
    %9 = vsyncpa [#allocation3], 0
    %s10 = scalar_lea.sflag [#allocation3], 1
    %11 = vsyncpa %s10, 0
    %12 = vsyncpa [#allocation6], 0
    %13 = vsyncpa [#allocation4], 0
    %s14 = scalar_lea.sflag [#allocation4], 1
    %15 = vsyncpa %s14, 0
    loop: start=0, step=1, limit=4
    $region2: #{tpu_custom_call.1} parent=1 // loop_pre_header
      _
    $region3: #{tpu_custom_call.1} parent=1 // loop_header
      %s17 = sphi 0, %s21
      %p18 = scmp.ge.s32.totalorder %s17, 4
      %s27 = sphi 0, %s29
      %s30 = sphi 0, %s27
      %s31 = sphi 0, %s30
      %s47 = sphi 0, %s31
      %s51 = sphi 0, %s51
      %s53 = sphi 0, %s51
      %s54 = sphi 0, %s53
      %s68 = sphi 0, %s54
      %s72 = sphi 0, %s72
      %s74 = sphi 0, %s72
      %s75 = sphi 0, %s74
      %s89 = sphi 0, %s75
      %s93 = sphi 0, %s93
      %s95 = sphi 0, %s93
      %s96 = sphi 0, %s95
      %s110 = sphi 0, %s96
      %s116 = sphi 0, %s118
      %s119 = sphi 0, %s116
      %s120 = sphi 0, %s119
      %s136 = sphi 0, %s120
    $region4: #{tpu_custom_call.1} parent=1 // loop_header_branch
      %20 = sbr.rel (%p18) target = $region8
    $region5: #{tpu_custom_call.1} parent=1 // loop_body
      %s22 = ssub.s32 %s17, 1
      %s23 = ssub.s32 %s17, 2
      %s24 = sadd.s32 %s17, 1
      %s25 = ssub.s32 %s17, %s24
      %p26 = scmp.eq.s32.totalorder %s25, 0
      %s28 = sadd.s32 %s27, 1
      %s29 = scalar_select %p26, %s27, %s28
      %p32 = pneg %p26
      %p33 = scmp.eq.s32.totalorder %s17, 1
      %p34 = por %p32, %p33
      %p35 = scmp.ne.s32.totalorder %s27, %s30
      %p36 = scmp.eq.s32.totalorder %s17, 0
      %p37 = por %p35, %p36
      %p38 = scmp.ne.s32.totalorder %s27, %s30
      %p39 = scmp.eq.s32.totalorder %s22, 1
      %p40 = por %p38, %p39
      %p41 = scmp.ne.s32.totalorder %s30, %s31
      %p42 = scmp.eq.s32.totalorder %s22, 0
      %p43 = por %p41, %p42
      %p44 = scmp.ne.s32.totalorder %s30, %s31
      %p45 = scmp.eq.s32.totalorder %s23, 1
      %p46 = por %p44, %p45
      %p48 = scmp.ne.s32.totalorder %s31, %s47
      %p49 = scmp.eq.s32.totalorder %s23, 0
      %p50 = por %p48, %p49
      %s52 = sadd.s32 %s51, 1
      %p55 = scmp.eq.s32.totalorder %s17, 1
      %p56 = scmp.ne.s32.totalorder %s51, %s53
      %p57 = scmp.eq.s32.totalorder %s17, 0
      %p58 = por %p56, %p57
      %p59 = scmp.ne.s32.totalorder %s51, %s53
      %p60 = scmp.eq.s32.totalorder %s22, 1
      %p61 = por %p59, %p60
      %p62 = scmp.ne.s32.totalorder %s53, %s54
      %p63 = scmp.eq.s32.totalorder %s22, 0
      %p64 = por %p62, %p63
      %p65 = scmp.ne.s32.totalorder %s53, %s54
      %p66 = scmp.eq.s32.totalorder %s23, 1
      %p67 = por %p65, %p66
      %p69 = scmp.ne.s32.totalorder %s54, %s68
      %p70 = scmp.eq.s32.totalorder %s23, 0
      %p71 = por %p69, %p70
      %s73 = sadd.s32 %s72, 1
      %p76 = scmp.eq.s32.totalorder %s17, 1
      %p77 = scmp.ne.s32.totalorder %s72, %s74
      %p78 = scmp.eq.s32.totalorder %s17, 0
      %p79 = por %p77, %p78
      %p80 = scmp.ne.s32.totalorder %s72, %s74
      %p81 = scmp.eq.s32.totalorder %s22, 1
      %p82 = por %p80, %p81
      %p83 = scmp.ne.s32.totalorder %s74, %s75
      %p84 = scmp.eq.s32.totalorder %s22, 0
      %p85 = por %p83, %p84
      %p86 = scmp.ne.s32.totalorder %s74, %s75
      %p87 = scmp.eq.s32.totalorder %s23, 1
      %p88 = por %p86, %p87
      %p90 = scmp.ne.s32.totalorder %s75, %s89
      %p91 = scmp.eq.s32.totalorder %s23, 0
      %p92 = por %p90, %p91
      %s94 = sadd.s32 %s93, 1
      %p97 = scmp.eq.s32.totalorder %s17, 1
      %p98 = scmp.ne.s32.totalorder %s93, %s95
      %p99 = scmp.eq.s32.totalorder %s17, 0
      %p100 = por %p98, %p99
      %p101 = scmp.ne.s32.totalorder %s93, %s95
      %p102 = scmp.eq.s32.totalorder %s22, 1
      %p103 = por %p101, %p102
      %p104 = scmp.ne.s32.totalorder %s95, %s96
      %p105 = scmp.eq.s32.totalorder %s22, 0
      %p106 = por %p104, %p105
      %p107 = scmp.ne.s32.totalorder %s95, %s96
      %p108 = scmp.eq.s32.totalorder %s23, 1
      %p109 = por %p107, %p108
      %p111 = scmp.ne.s32.totalorder %s96, %s110
      %p112 = scmp.eq.s32.totalorder %s23, 0
      %p113 = por %p111, %p112
      %s114 = ssub.s32 %s17, %s24
      %p115 = scmp.eq.s32.totalorder %s114, 0
      %s117 = sadd.s32 %s116, 1
      %s118 = scalar_select %p115, %s116, %s117
      %p121 = pneg %p115
      %p122 = scmp.eq.s32.totalorder %s17, 1
      %p123 = por %p121, %p122
      %p124 = scmp.ne.s32.totalorder %s116, %s119
      %p125 = scmp.eq.s32.totalorder %s17, 0
      %p126 = por %p124, %p125
      %p127 = scmp.ne.s32.totalorder %s116, %s119
      %p128 = scmp.eq.s32.totalorder %s22, 1
      %p129 = por %p127, %p128
      %p130 = scmp.ne.s32.totalorder %s119, %s120
      %p131 = scmp.eq.s32.totalorder %s22, 0
      %p132 = por %p130, %p131
      %p133 = scmp.ne.s32.totalorder %s119, %s120
      %p134 = scmp.eq.s32.totalorder %s23, 1
      %p135 = por %p133, %p134
      %p137 = scmp.ne.s32.totalorder %s120, %s136
      %p138 = scmp.eq.s32.totalorder %s23, 0
      %p139 = por %p137, %p138
      %p140 = scmp.le.s32.totalorder 1, %s17
      %p141 = scmp.lt.s32.totalorder %s17, 3
      %p142 = pnand %p140, %p141
      %p143 = pneg %p142
      // Predicated region
      $region9: #{tpu_custom_call.1} parent=5 // pred_check
        _
      $region10: #{tpu_custom_call.1} parent=5 // pred_check_branch
        %145 = sbr.rel (%p142) target = $region12
      $region11: #{tpu_custom_call.1} parent=5 // pred_region
        %s146 = ssub.s32 %s17, 1
        // Predicated region
        $region13: #{tpu_custom_call.1} parent=11 // pred_check
          %p147 = pneg %p64
        $region14: #{tpu_custom_call.1} parent=11 // pred_check_branch
          %149 = sbr.rel (%p147) target = $region16
        $region15: #{tpu_custom_call.1} parent=11 // pred_region
          _
        $region16: #{tpu_custom_call.1} parent=11 // pred_fallthru
          _
        // Predicated region
        $region17: #{tpu_custom_call.1} parent=11 // pred_check
          %p150 = pneg %p85
        $region18: #{tpu_custom_call.1} parent=11 // pred_check_branch
          %152 = sbr.rel (%p150) target = $region20
        $region19: #{tpu_custom_call.1} parent=11 // pred_region
          _
        $region20: #{tpu_custom_call.1} parent=11 // pred_fallthru
          _
        // Predicated region
        $region21: #{tpu_custom_call.1} parent=11 // pred_check
          %p153 = pneg %p106
        $region22: #{tpu_custom_call.1} parent=11 // pred_check_branch
          %155 = sbr.rel (%p153) target = $region24
        $region23: #{tpu_custom_call.1} parent=11 // pred_region
          %s157 = ssub.s32 2304, 2304
          %158 = vsyncadd [#allocation6], %s157
          %s159 = sshll.u32 [#allocation5], 4
          %s160 = int_to_ptr.vmem [resolvable:$true] %s159
          %165 = dma.hbm_to_vmem [thread:$0]  %s3, 2304, %s160, [#allocation6], 256, 256, 16
        $region24: #{tpu_custom_call.1} parent=11 // pred_fallthru
          _
      $region12: #{tpu_custom_call.1} parent=5 // pred_fallthru
        _
      %p166 = scmp.lt.s32.totalorder %s17, 2
      // Predicated region
      $region25: #{tpu_custom_call.1} parent=5 // pred_check
        %p167 = pneg %p166
      $region26: #{tpu_custom_call.1} parent=5 // pred_check_branch
        %169 = sbr.rel (%p167) target = $region28
      $region27: #{tpu_custom_call.1} parent=5 // pred_region
        // Predicated region
        $region29: #{tpu_custom_call.1} parent=27 // pred_check
          %p170 = pneg %p37
        $region30: #{tpu_custom_call.1} parent=27 // pred_check_branch
          %172 = sbr.rel (%p170) target = $region32
        $region31: #{tpu_custom_call.1} parent=27 // pred_region
          %s173 = sand.u32 %s27, 1
          %s174 = scalar_lea.sflag [#allocation3], %s173
          %s175 = sand.u32 %s27, 1
          %s176 = smul.addr %s175, 16
          %s177 = scalar_lea.vmem [#allocation2], %s176
          %s179 = ssub.s32 256, 256
          %180 = vsyncadd %s174, %s179
          %s181 = smul.addr %s17, 2
          %s182 = smul.addr %s181, 128
          %s183 = scalar_lea.hbm %s0, %s182
          %s185 = sshll.u32 %s177, 4
          %s186 = int_to_ptr.vmem [resolvable:$true] %s185
          %188 = dma.hbm_to_vmem [thread:$0]  %s183, 256, %s186, %s174
        $region32: #{tpu_custom_call.1} parent=27 // pred_fallthru
          _
      $region28: #{tpu_custom_call.1} parent=5 // pred_fallthru
        _
      %p189 = scmp.le.s32.totalorder 1, %s17
      %p190 = scmp.lt.s32.totalorder %s17, 3
      %p191 = pnand %p189, %p190
      %p192 = pneg %p191
      // Predicated region
      $region33: #{tpu_custom_call.1} parent=5 // pred_check
        _
      $region34: #{tpu_custom_call.1} parent=5 // pred_check_branch
        %194 = sbr.rel (%p191) target = $region36
      $region35: #{tpu_custom_call.1} parent=5 // pred_region
        %s195 = ssub.s32 %s17, 1
        %s196 = sand.u32 %s30, 1
        %s197 = scalar_lea.sflag [#allocation3], %s196
        %s198 = sand.u32 %s30, 1
        %s199 = smul.addr %s198, 16
        %s200 = scalar_lea.vmem [#allocation2], %s199
        // Predicated region
        $region37: #{tpu_custom_call.1} parent=35 // pred_check
          %p201 = pneg %p43
        $region38: #{tpu_custom_call.1} parent=35 // pred_check_branch
          %203 = sbr.rel (%p201) target = $region40
        $region39: #{tpu_custom_call.1} parent=35 // pred_region
          %204 = dma.done %s197, 256
        $region40: #{tpu_custom_call.1} parent=35 // pred_fallthru
          _
        // Predicated region
        $region41: #{tpu_custom_call.1} parent=35 // pred_check
          %p205 = pneg %p106
        $region42: #{tpu_custom_call.1} parent=35 // pred_check_branch
          %207 = sbr.rel (%p205) target = $region44
        $region43: #{tpu_custom_call.1} parent=35 // pred_region
          %208 = dma.done [#allocation6], 2304
        $region44: #{tpu_custom_call.1} parent=35 // pred_fallthru
          _
        %s209 = sand.u32 %s30, 1
        %s210 = scalar_lea.sflag [#allocation3], %s209
        %s211 = sand.u32 %s30, 1
        %s212 = smul.addr %s211, 16
        %s213 = scalar_lea.vmem [#allocation2], %s212
        %p214 = pneg %p43
        %p215 = pneg %p40
        %p216 = pneg %p64
        %p217 = pneg %p61
        %p218 = pneg %p85
        %p219 = pneg %p82
        %p220 = pneg %p106
        %p221 = pneg %p103
        %p222 = pneg %p132
        %p223 = pneg %p129
        %s224 = sand.u32 %s119, 1
        %s225 = scalar_lea.sflag [#allocation4], %s224
        %s226 = sand.u32 %s119, 1
        %s227 = smul.addr %s226, 16
        %s228 = scalar_lea.vmem [#allocation7], %s227
        %v230 = vld [vmem:[%s200] sm:$0xff]
        %v231 = vld [vmem:[%s200 + $0x8] sm:$0xff]
        %v232 = vld [vmem:[#allocation5] sm:$0xff]
        %v233 = vld [vmem:[#allocation5 + $0x8] sm:$0xff]
        %v234 = vld [vmem:[#allocation5 + $0x10] sm:$0xff]
        %v235 = vld [vmem:[#allocation5 + $0x18] sm:$0xff]
        %v236 = vld [vmem:[#allocation5 + $0x20] sm:$0xff]
        %v237 = vld [vmem:[#allocation5 + $0x28] sm:$0xff]
        %v238 = vld [vmem:[#allocation5 + $0x30] sm:$0xff]
        %v239 = vld [vmem:[#allocation5 + $0x38] sm:$0xff]
        %v240 = vld [vmem:[#allocation5 + $0x40] sm:$0xff]
        %v241 = vld [vmem:[#allocation5 + $0x48] sm:$0xff]
        %v242 = vld [vmem:[#allocation5 + $0x50] sm:$0xff]
        %v243 = vld [vmem:[#allocation5 + $0x58] sm:$0xff]
        %v244 = vld [vmem:[#allocation5 + $0x60] sm:$0xff]
        %v245 = vld [vmem:[#allocation5 + $0x68] sm:$0xff]
        %v246 = vld [vmem:[#allocation5 + $0x70] sm:$0xff]
        %v247 = vld [vmem:[#allocation5 + $0x78] sm:$0xff]
        %v248 = vld [vmem:[#allocation5 + $0x80] sm:$0xff]
        %v249 = vld [vmem:[#allocation5 + $0x88] sm:$0xff]
        %250 = vrot.lane.b32.xlu0 %v230, 17
        %v251 = vpop.permute.xlu0 %250
        %252 = vrot.lane.b32.xlu0 %v231, 17
        %v253 = vpop.permute.xlu0 %252
        %v254 = vlaneseq
        %v255 = vand.u32 %v254, 127
        %vm256 = vcmp.lt.s32.totalorder %v255, 17
        %v257 = vsel %vm256, %v251, %v253
        %v258 = vsel %vm256, %v253, %v251
        %259 = vrot.lane.b32.xlu0 %v230, 16
        %v260 = vpop.permute.xlu0 %259
        %261 = vrot.lane.b32.xlu0 %v231, 16
        %v262 = vpop.permute.xlu0 %261
        %vm263 = vcmp.lt.s32.totalorder %v255, 16
        %v264 = vsel %vm263, %v260, %v262
        %v265 = vsel %vm263, %v262, %v260
        %266 = vrot.lane.b32.xlu0 %v230, 15
        %v267 = vpop.permute.xlu0 %266
        %268 = vrot.lane.b32.xlu0 %v231, 15
        %v269 = vpop.permute.xlu0 %268
        %vm270 = vcmp.lt.s32.totalorder %v255, 15
        %v271 = vsel %vm270, %v267, %v269
        %v272 = vsel %vm270, %v269, %v267
        %273 = vrot.lane.b32.xlu0 %v230, 1
        %v274 = vpop.permute.xlu0 %273
        %275 = vrot.lane.b32.xlu0 %v231, 1
        %v276 = vpop.permute.xlu0 %275
        %vm277 = vcmp.lt.s32.totalorder %v255, 1
        %v278 = vsel %vm277, %v274, %v276
        %v279 = vsel %vm277, %v276, %v274
        %280 = vrot.lane.b32.xlu0 %v230, 127
        %v281 = vpop.permute.xlu0 %280
        %282 = vrot.lane.b32.xlu0 %v231, 127
        %v283 = vpop.permute.xlu0 %282
        %vm284 = vcmp.lt.s32.totalorder %v255, 127
        %v285 = vsel %vm284, %v281, %v283
        %v286 = vsel %vm284, %v283, %v281
        %287 = vrot.lane.b32.xlu0 %v230, 113
        %v288 = vpop.permute.xlu0 %287
        %289 = vrot.lane.b32.xlu0 %v231, 113
        %v290 = vpop.permute.xlu0 %289
        %vm291 = vcmp.lt.s32.totalorder %v255, 113
        %v292 = vsel %vm291, %v288, %v290
        %v293 = vsel %vm291, %v290, %v288
        %294 = vrot.lane.b32.xlu0 %v230, 112
        %v295 = vpop.permute.xlu0 %294
        %296 = vrot.lane.b32.xlu0 %v231, 112
        %v297 = vpop.permute.xlu0 %296
        %vm298 = vcmp.lt.s32.totalorder %v255, 112
        %v299 = vsel %vm298, %v295, %v297
        %v300 = vsel %vm298, %v297, %v295
        %301 = vrot.lane.b32.xlu0 %v230, 111
        %v302 = vpop.permute.xlu0 %301
        %303 = vrot.lane.b32.xlu0 %v231, 111
        %v304 = vpop.permute.xlu0 %303
        %vm305 = vcmp.lt.s32.totalorder %v255, 111
        %v306 = vsel %vm305, %v302, %v304
        %v307 = vsel %vm305, %v304, %v302
        %v308 = vmul.f32 %v258, %v232
        %v309 = vmul.f32 %v257, %v233
        %v310 = vmul.f32 %v265, %v234
        %v311 = vmul.f32 %v264, %v235
        %v312 = vmul.f32 %v272, %v236
        %v313 = vmul.f32 %v271, %v237
        %v314 = vmul.f32 %v279, %v238
        %v315 = vmul.f32 %v278, %v239
        %v316 = vmul.f32 %v230, %v240
        %v317 = vmul.f32 %v231, %v241
        %v318 = vmul.f32 %v285, %v242
        %v319 = vmul.f32 %v286, %v243
        %v320 = vmul.f32 %v292, %v244
        %v321 = vmul.f32 %v293, %v245
        %v322 = vmul.f32 %v299, %v246
        %v323 = vmul.f32 %v300, %v247
        %v324 = vmul.f32 %v306, %v248
        %v325 = vmul.f32 %v307, %v249
        %v326 = vpack.c.bf16 %v310, %v308
        %v327 = vpack.c.bf16 %v311, %v309
        %v328 = vpack.c.bf16 %v314, %v312
        %v329 = vpack.c.bf16 %v315, %v313
        %v330 = vpack.c.bf16 %v318, %v316
        %v331 = vpack.c.bf16 %v319, %v317
        %v332 = vpack.c.bf16 %v322, %v320
        %v333 = vpack.c.bf16 %v323, %v321
        %v334 = vpack.c.bf16 %v324, %v324
        %v335 = vpack.c.bf16 %v325, %v325
        %v336 = vld [vmem:[%s1] sm:$0xf]
        %v337 = vld [vmem:[%s2] sm:$0xff]
        %339 = vset.pattern.permute.xlu0 0
        %340 = vperm.xlu0 %339, %v337
        %v341 = vpop.permute.xlu0 %340
        %vm343 = vcmask 588800
        %v345 = vsel %vm343, %v336, 0
        %vm347 = vcmask 1043456
        %v349 = vsel %vm347, %v334, 0
        %v352 = vsel %vm347, %v335, 0
        %354 = vmatprep.subr.bf16.mxu0 %v327
        %355 = vmatpush1.bf16.msra.mxu0 %v326
        %356 = vmatprep.subr.bf16.mxu0 %v329
        %357 = vmatpush1.bf16.msra.mxu0 %v328
        %358 = vmatprep.subr.bf16.mxu0 %v331
        %359 = vmatpush1.bf16.msra.mxu0 %v330
        %360 = vmatprep.subr.bf16.mxu0 %v333
        %361 = vmatpush1.bf16.msra.mxu0 %v332
        %362 = vmatprep.subr.bf16.mxu0 %v352
        %363 = vmatpush1.bf16.msra.mxu0 %v349
        %364 = vmatprep.subr.bf16.mxu0 0
        %365 = vmatpush1.bf16.msra.mxu0 0
        %366 = vmatprep.subr.bf16.mxu0 0
        %367 = vmatpush1.bf16.msra.mxu0 0
        %368 = vmatprep.subr.bf16.mxu0 0
        %369 = vmatpush1.bf16.msra.mxu0 0
        %370 = vmatprep.subr.bf16.mxu0 0
        %371 = vmatpush1.bf16.msra.mxu0 0
        %372 = vmatprep.subr.bf16.mxu0 0
        %373 = vmatpush1.bf16.msra.mxu0 0
        %374 = vmatprep.subr.bf16.mxu0 0
        %375 = vmatpush1.bf16.msra.mxu0 0
        %376 = vmatprep.subr.bf16.mxu0 0
        %377 = vmatpush1.bf16.msra.mxu0 0
        %378 = vmatprep.subr.bf16.mxu0 0
        %379 = vmatpush1.bf16.msra.mxu0 0
        %380 = vmatprep.subr.bf16.mxu0 0
        %381 = vmatpush1.bf16.msra.mxu0 0
        %382 = vmatprep.subr.bf16.mxu0 0
        %383 = vmatpush1.bf16.msra.mxu0 0
        %384 = vmatprep.subr.bf16.mxu0 0
        %385 = vmatpush1.bf16.msra.mxu0 0
        %386 = vmatprep.mubr.bf16.mxu0 0
        %387 = vmatmul.mubr.bf16.gmra.mrb[0].mxu0 %v345
        %v388 = vpop.f32.mrb[0].mxu0
        %v389 = vadd.f32 %v341, %v388
        %v390 = vpop.f32.mrb[0].mxu0
        %v391 = vadd.f32 %v341, %v390
        %v392 = vpop.f32.mrb[0].mxu0
        %v393 = vpop.f32.mrb[0].mxu0
        %394 = vdwg.mxu0
        %v395 = vmax.f32 %v389, 0.0
        %v396 = vmax.f32 %v391, 0.0
        %397 = vrot.lane.b32.xlu0 %v395, 17
        %v398 = vpop.permute.xlu0 %397
        %399 = vrot.lane.b32.xlu0 %v396, 17
        %v400 = vpop.permute.xlu0 %399
        %v401 = vsel %vm256, %v398, %v400
        %v402 = vsel %vm256, %v400, %v398
        %403 = vrot.lane.b32.xlu0 %v395, 16
        %v404 = vpop.permute.xlu0 %403
        %405 = vrot.lane.b32.xlu0 %v396, 16
        %v406 = vpop.permute.xlu0 %405
        %v407 = vsel %vm263, %v404, %v406
        %v408 = vsel %vm263, %v406, %v404
        %409 = vrot.lane.b32.xlu0 %v395, 15
        %v410 = vpop.permute.xlu0 %409
        %411 = vrot.lane.b32.xlu0 %v396, 15
        %v412 = vpop.permute.xlu0 %411
        %v413 = vsel %vm270, %v410, %v412
        %v414 = vsel %vm270, %v412, %v410
        %415 = vrot.lane.b32.xlu0 %v395, 1
        %v416 = vpop.permute.xlu0 %415
        %417 = vrot.lane.b32.xlu0 %v396, 1
        %v418 = vpop.permute.xlu0 %417
        %v419 = vsel %vm277, %v416, %v418
        %v420 = vsel %vm277, %v418, %v416
        %421 = vrot.lane.b32.xlu0 %v395, 127
        %v422 = vpop.permute.xlu0 %421
        %423 = vrot.lane.b32.xlu0 %v396, 127
        %v424 = vpop.permute.xlu0 %423
        %v425 = vsel %vm284, %v422, %v424
        %v426 = vsel %vm284, %v424, %v422
        %427 = vrot.lane.b32.xlu0 %v395, 113
        %v428 = vpop.permute.xlu0 %427
        %429 = vrot.lane.b32.xlu0 %v396, 113
        %v430 = vpop.permute.xlu0 %429
        %v431 = vsel %vm291, %v428, %v430
        %v432 = vsel %vm291, %v430, %v428
        %433 = vrot.lane.b32.xlu0 %v395, 112
        %v434 = vpop.permute.xlu0 %433
        %435 = vrot.lane.b32.xlu0 %v396, 112
        %v436 = vpop.permute.xlu0 %435
        %v437 = vsel %vm298, %v434, %v436
        %v438 = vsel %vm298, %v436, %v434
        %439 = vrot.lane.b32.xlu0 %v395, 111
        %v440 = vpop.permute.xlu0 %439
        %441 = vrot.lane.b32.xlu0 %v396, 111
        %v442 = vpop.permute.xlu0 %441
        %v443 = vsel %vm305, %v440, %v442
        %v444 = vsel %vm305, %v442, %v440
        %v445 = vmul.f32 %v402, %v232
        %v446 = vmul.f32 %v401, %v233
        %v447 = vmul.f32 %v408, %v234
        %v448 = vmul.f32 %v407, %v235
        %v449 = vmul.f32 %v414, %v236
        %v450 = vmul.f32 %v413, %v237
        %v451 = vmul.f32 %v420, %v238
        %v452 = vmul.f32 %v419, %v239
        %v453 = vmul.f32 %v395, %v240
        %v454 = vmul.f32 %v396, %v241
        %v455 = vmul.f32 %v425, %v242
        %v456 = vmul.f32 %v426, %v243
        %v457 = vmul.f32 %v431, %v244
        %v458 = vmul.f32 %v432, %v245
        %v459 = vmul.f32 %v437, %v246
        %v460 = vmul.f32 %v438, %v247
        %v461 = vmul.f32 %v443, %v248
        %v462 = vmul.f32 %v444, %v249
        %v463 = vpack.c.bf16 %v447, %v445
        %v464 = vpack.c.bf16 %v448, %v446
        %v465 = vpack.c.bf16 %v451, %v449
        %v466 = vpack.c.bf16 %v452, %v450
        %v467 = vpack.c.bf16 %v455, %v453
        %v468 = vpack.c.bf16 %v456, %v454
        %v469 = vpack.c.bf16 %v459, %v457
        %v470 = vpack.c.bf16 %v460, %v458
        %v471 = vpack.c.bf16 %v461, %v461
        %v472 = vpack.c.bf16 %v462, %v462
        %s473 = scalar_lea.vmem %s1, 4
        %v474 = vld [vmem:[%s473] sm:$0xf]
        %s475 = scalar_lea.vmem %s2, 8
        %v476 = vld [vmem:[%s475] sm:$0xff]
        %478 = vset.pattern.permute.xlu0 0
        %479 = vperm.xlu0 %478, %v476
        %v480 = vpop.permute.xlu0 %479
        %v483 = vsel %vm343, %v474, 0
        %v486 = vsel %vm347, %v471, 0
        %v489 = vsel %vm347, %v472, 0
        %491 = vmatprep.subr.bf16.mxu0 %v464
        %492 = vmatpush1.bf16.msra.mxu0 %v463
        %493 = vmatprep.subr.bf16.mxu0 %v466
        %494 = vmatpush1.bf16.msra.mxu0 %v465
        %495 = vmatprep.subr.bf16.mxu0 %v468
        %496 = vmatpush1.bf16.msra.mxu0 %v467
        %497 = vmatprep.subr.bf16.mxu0 %v470
        %498 = vmatpush1.bf16.msra.mxu0 %v469
        %499 = vmatprep.subr.bf16.mxu0 %v489
        %500 = vmatpush1.bf16.msra.mxu0 %v486
        %501 = vmatprep.subr.bf16.mxu0 0
        %502 = vmatpush1.bf16.msra.mxu0 0
        %503 = vmatprep.subr.bf16.mxu0 0
        %504 = vmatpush1.bf16.msra.mxu0 0
        %505 = vmatprep.subr.bf16.mxu0 0
        %506 = vmatpush1.bf16.msra.mxu0 0
        %507 = vmatprep.subr.bf16.mxu0 0
        %508 = vmatpush1.bf16.msra.mxu0 0
        %509 = vmatprep.subr.bf16.mxu0 0
        %510 = vmatpush1.bf16.msra.mxu0 0
        %511 = vmatprep.subr.bf16.mxu0 0
        %512 = vmatpush1.bf16.msra.mxu0 0
        %513 = vmatprep.subr.bf16.mxu0 0
        %514 = vmatpush1.bf16.msra.mxu0 0
        %515 = vmatprep.subr.bf16.mxu0 0
        %516 = vmatpush1.bf16.msra.mxu0 0
        %517 = vmatprep.subr.bf16.mxu0 0
        %518 = vmatpush1.bf16.msra.mxu0 0
        %519 = vmatprep.subr.bf16.mxu0 0
        %520 = vmatpush1.bf16.msra.mxu0 0
        %521 = vmatprep.subr.bf16.mxu0 0
        %522 = vmatpush1.bf16.msra.mxu0 0
        %523 = vmatprep.mubr.bf16.mxu0 0
        %524 = vmatmul.mubr.bf16.gmra.mrb[0].mxu0 %v483
        %v525 = vpop.f32.mrb[0].mxu0
        %v526 = vadd.f32 %v480, %v525
        %v527 = vpop.f32.mrb[0].mxu0
        %v528 = vadd.f32 %v480, %v527
        %v529 = vpop.f32.mrb[0].mxu0
        %v530 = vpop.f32.mrb[0].mxu0
        %531 = vdwg.mxu0
        %v532 = vmax.f32 %v526, 0.0
        %v533 = vmax.f32 %v528, 0.0
        %v534 = vadd.f32 %v532, %v230
        %v535 = vadd.f32 %v533, %v231
        %536 = vst [vmem:[%s228] sm:$0xff] %v534
        %537 = vst [vmem:[%s228 + $0x8] sm:$0xff] %v535
        %s538 = sand.u32 %s119, 1
        %s539 = scalar_lea.sflag [#allocation4], %s538
        %s540 = sand.u32 %s119, 1
        %s541 = smul.addr %s540, 16
        %s542 = scalar_lea.vmem [#allocation7], %s541
        // Predicated region
        $region45: #{tpu_custom_call.1} parent=35 // pred_check
          %p543 = pneg %p129
        $region46: #{tpu_custom_call.1} parent=35 // pred_check_branch
          %545 = sbr.rel (%p543) target = $region48
        $region47: #{tpu_custom_call.1} parent=35 // pred_region
          %s547 = ssub.s32 256, 256
          %548 = vsyncadd %s539, %s547
          %s549 = smul.addr %s22, 2
          %s550 = smul.addr %s549, 128
          %s551 = scalar_lea.hbm %s4, %s550
          %s553 = sshll.u32 %s542, 4
          %s554 = int_to_ptr.vmem [resolvable:$true] %s553
          %556 = dma.vmem_to_hbm [thread:$0]  %s554, 256, %s551, %s539
        $region48: #{tpu_custom_call.1} parent=35 // pred_fallthru
          _
      $region36: #{tpu_custom_call.1} parent=5 // pred_fallthru
        _
      %p557 = scmp.le.s32.totalorder 2, %s17
      // Predicated region
      $region49: #{tpu_custom_call.1} parent=5 // pred_check
        %p558 = pneg %p557
      $region50: #{tpu_custom_call.1} parent=5 // pred_check_branch
        %560 = sbr.rel (%p558) target = $region52
      $region51: #{tpu_custom_call.1} parent=5 // pred_region
        %s561 = ssub.s32 %s17, 2
        // Predicated region
        $region53: #{tpu_custom_call.1} parent=51 // pred_check
          %p562 = pneg %p135
        $region54: #{tpu_custom_call.1} parent=51 // pred_check_branch
          %564 = sbr.rel (%p562) target = $region56
        $region55: #{tpu_custom_call.1} parent=51 // pred_region
          %s565 = sand.u32 %s120, 1
          %s566 = scalar_lea.sflag [#allocation4], %s565
          %s567 = sand.u32 %s120, 1
          %s568 = smul.addr %s567, 16
          %s569 = scalar_lea.vmem [#allocation7], %s568
          %570 = dma.done %s566, 256
        $region56: #{tpu_custom_call.1} parent=51 // pred_fallthru
          _
      $region52: #{tpu_custom_call.1} parent=5 // pred_fallthru
        _
    $region6: #{tpu_custom_call.1} parent=1 // loop_footer
      %s21 = sadd.s32 1, %s17
    $region7: #{tpu_custom_call.1} parent=1 // loop_footer_branch
      %16 = sbr.rel target = $region3
    $region8: #{tpu_custom_call.1} parent=1 // loop_exit
      _
    %571 = vsyncpa [#allocation3], 1
    %s572 = scalar_lea.sflag [#allocation3], 1
    %573 = vsyncpa %s572, 1
    %574 = vsyncpa [#allocation6], 1
    %575 = vsyncpa [#allocation4], 1
    %s576 = scalar_lea.sflag [#allocation4], 1
    %577 = vsyncpa %s576, 1

</llo_original>
